<compile_context>
chip_gen: v5e
topology: v5e:2x2
jax: 0.10.0
libtpu: 0.0.40
codegen_flags: <defaults>
</compile_context>

<pallas_src>
import jax
import jax.numpy as jnp
import numpy as np
from jax.experimental import pallas as pl
from jax.experimental.pallas import tpu as pltpu
from jax.scipy.linalg import block_diag


# ------------------------------- kernel ------------------------------------

def _mvfd_fused_kernel(x_ref, con_ref,
                       we1_ref, be1_ref, we2_ref, be2_ref,
                       wrc_ref, brc_ref,
                       wd1rc_ref, wd1con_ref, bd1_ref,
                       wd2_ref, bd2_ref,
                       out_ref):
    """Per batch-tile fused MLP chain (all views at once, block-diag weights)."""
    f32 = jnp.float32
    bf16 = jnp.bfloat16

    def sig(z):
        # exact sigmoid with a single EUP (tanh) push per element
        return 0.5 * jnp.tanh(0.5 * z) + 0.5

    def mm(a, w_ref):
        # bf16 MXU operands, f32 accumulation
        return jnp.dot(a.astype(bf16), w_ref[...], preferred_element_type=f32)

    # encoders (all views): Linear + Sigmoid, Linear + Sigmoid
    h = sig(mm(x_ref[...], we1_ref) + be1_ref[...])          # (tm, V*h1)
    h = sig(mm(h, we2_ref) + be2_ref[...])                    # (tm, V*h2)

    # fused heads [red | com] per view, padded to a 128-lane boundary
    rc = sig(mm(h, wrc_ref) + brc_ref[...])                   # (tm, RC_PAD)

    # decoder layer 1: cat([red, com, con]) @ Wd1 as two matmuls
    # (wd1rc has zero rows for the rc pad lanes, so the padding contributes 0)
    d = sig(mm(rc, wd1rc_ref) + mm(con_ref[...], wd1con_ref) + bd1_ref[...])

    # decoder layer 2: back to (lane-padded) concatenated view dims
    rec = sig(mm(d, wd2_ref) + bd2_ref[...])                  # (tm, REC_PAD)

    # lane-dense output slab [rc | rec]; both stores are 128-lane aligned
    rc_w = rc.shape[-1]
    out_ref[:, :rc_w] = rc
    out_ref[:, rc_w:] = rec


# ------------------------------- wrapper ------------------------------------

def _round_up(n, m):
    return -(-n // m) * m


def _pick_tiling(b):
    """Pick the batch tile first, then pad the batch to >= 2 tiles of it.

    tm is capped at 256 rows (safe against v7x's 64 MiB VMEM even for large
    view dims) and we always produce at least 2 batch tiles so BlockSpec
    double-buffering overlaps DMA with compute and v7x's two TensorCores both
    get grid work."""
    for tm in (256, 128, 64):
        if b >= 2 * tm:
            return tm, _round_up(b, tm)
    tm = 64
    return tm, 2 * tm


def _mvfd_fused_call(x_cat, con, fp, out_w, tm):
    """x_cat: (B_pad, sum(view_dims)) bf16, con: (B_pad, DF) bf16."""
    b_pad, x_w = x_cat.shape
    df = con.shape[1]
    grid = (b_pad // tm,)

    def act(width):                       # batch-tiled activations
        return pl.BlockSpec((tm, width), lambda i: (i, 0))

    def full(arr):                        # weights/biases: constant index_map
        return pl.BlockSpec(arr.shape, lambda i: (0, 0))

    in_specs = [
        act(x_w), act(df),
        full(fp["we1"]), full(fp["be1"]),
        full(fp["we2"]), full(fp["be2"]),
        full(fp["wrc"]), full(fp["brc"]),
        full(fp["wd1rc"]), full(fp["wd1con"]), full(fp["bd1"]),
        full(fp["wd2"]), full(fp["bd2"]),
    ]

    return pl.pallas_call(
        _mvfd_fused_kernel,
        out_shape=jax.ShapeDtypeStruct((b_pad, out_w), jnp.float32),
        grid=grid,
        in_specs=in_specs,
        out_specs=pl.BlockSpec((tm, out_w), lambda i: (i, 0)),
        compiler_params=pltpu.CompilerParams(
            dimension_semantics=("parallel",),
            vmem_limit_bytes=32 * 1024 * 1024),
    )(x_cat, con,
      fp["we1"], fp["be1"], fp["we2"], fp["be2"],
      fp["wrc"], fp["brc"],
      fp["wd1rc"], fp["wd1con"], fp["bd1"],
      fp["wd2"], fp["bd2"])


def mvfd_forward(data, batch_idx, feature_con, fused, view_shape, dim_feature):
    """JAX glue mirroring MvFD.forward, single fused pallas_call for all views."""
    fp, rc_pad, rec_pad = fused
    view_num = len(data)
    b = data[0].shape[0]
    df = dim_feature
    tm, b_pad = _pick_tiling(b)

    # concatenate views along lanes; pad batch rows; bf16 halves input DMA
    x_cat = jnp.concatenate(data, axis=1)                     # (B, sum(vdims))
    x_cat = jnp.pad(x_cat, ((0, b_pad - b), (0, 0))).astype(jnp.bfloat16)

    con = feature_con[batch_idx]                               # (B, DF) gather
    con = jnp.pad(con, ((0, b_pad - b), (0, 0))).astype(jnp.bfloat16)

    slab = _mvfd_fused_call(x_cat, con, fp, rc_pad + rec_pad, tm)

    feature_red, feature_com, recs = [], [], []
    off = rc_pad
    for v in range(view_num):
        base = v * 2 * df
        feature_red.append(slab[:b, base:base + df])
        feature_com.append(slab[:b, base + df:base + 2 * df])
        recs.append(slab[:b, off:off + view_shape[v]])
        off += view_shape[v]
    return [feature_red, feature_com, recs]


# ------------------------- parameter construction ---------------------------

def init_view_params(key, view_dim, hidden1, hidden2, dim_feature):
    """Per-view weights, stored (in_features, out_features)."""
    ks = jax.random.split(key, 12)

    def xavier(k, fi, fo):
        std = np.sqrt(2.0 / (fi + fo))
        return std * jax.random.normal(k, (fi, fo), dtype=jnp.float32)

    def bias(k, n):
        return 0.1 * jax.random.normal(k, (1, n), dtype=jnp.float32)

    p = {}
    p["we1"], p["be1"] = xavier(ks[0], view_dim, hidden1), bias(ks[1], hidden1)
    p["we2"], p["be2"] = xavier(ks[2], hidden1, hidden2), bias(ks[3], hidden2)
    p["wr"], p["br"] = xavier(ks[4], hidden2, dim_feature), bias(ks[5], dim_feature)
    p["wc"], p["bc"] = xavier(ks[6], hidden2, dim_feature), bias(ks[7], dim_feature)
    p["wd1"], p["bd1"] = xavier(ks[8], 3 * dim_feature, hidden1), bias(ks[9], hidden1)
    p["wd2"], p["bd2"] = xavier(ks[10], hidden1, view_dim), bias(ks[11], view_dim)
    return p


def fuse_view_params(view_params, view_shape, dim_feature):
    """Fold the view axis into the lane dim via block-diagonal weights.

    Returns (params_dict, rc_pad, rec_pad) where rc_pad / rec_pad are the
    128-lane-aligned widths of the [red|com] and reconstruction segments."""
    df = dim_feature
    V = len(view_params)
    x_w = sum(view_shape)
    rc_w = 2 * df * V
    rc_pad = _round_up(rc_w, 128)
    rec_pad = _round_up(x_w, 128)

    def bd(name):
        return block_diag(*[p[name] for p in view_params])

    def cat_bias(name):
        return jnp.concatenate([p[name] for p in view_params], axis=1)

    fp = {}
    # encoders
    fp["we1"] = bd("we1")                                      # (x_w, V*h1)
    fp["be1"] = cat_bias("be1")
    fp["we2"] = bd("we2")                                      # (V*h1, V*h2)
    fp["be2"] = cat_bias("be2")
    # fused heads [red|com] per view, output padded to 128 lanes
    wrc = block_diag(*[jnp.concatenate([p["wr"], p["wc"]], axis=1)
                       for p in view_params])                  # (V*h2, rc_w)
    brc = jnp.concatenate([jnp.concatenate([p["br"], p["bc"]], axis=1)
                           for p in view_params], axis=1)
    fp["wrc"] = jnp.pad(wrc, ((0, 0), (0, rc_pad - rc_w)))
    fp["brc"] = jnp.pad(brc, ((0, 0), (0, rc_pad - rc_w)))
    # decoder layer 1: split wd1 into the rows hit by [red|com] (block-diag,
    # zero rows for the rc pad lanes) and the rows hit by the shared con.
    wd1rc = block_diag(*[p["wd1"][:2 * df] for p in view_params])   # (rc_w, V*h1)
    fp["wd1rc"] = jnp.pad(wd1rc, ((0, rc_pad - rc_w), (0, 0)))
    fp["wd1con"] = jnp.concatenate([p["wd1"][2 * df:] for p in view_params],
                                   axis=1)                     # (df, V*h1)
    fp["bd1"] = cat_bias("bd1")
    # decoder layer 2: back to concatenated view dims, padded to 128 lanes
    wd2 = bd("wd2")                                            # (V*h1, x_w)
    fp["wd2"] = jnp.pad(wd2, ((0, 0), (0, rec_pad - x_w)))
    fp["bd2"] = jnp.pad(cat_bias("bd2"), ((0, 0), (0, rec_pad - x_w)))

    # bf16 weight storage: MXU is bf16-native; halves weight DMA / VMEM bytes.
    for k in ("we1", "we2", "wrc", "wd1rc", "wd1con", "wd2"):
        fp[k] = fp[k].astype(jnp.bfloat16)
    return fp, rc_pad, rec_pad


# ------------------------------ reference -----------------------------------

def _ref_view(x, con, p):
    h = jax.nn.sigmoid(x @ p["we1"] + p["be1"])
    h = jax.nn.sigmoid(h @ p["we2"] + p["be2"])
    red = jax.nn.sigmoid(h @ p["wr"] + p["br"])
    com = jax.nn.sigmoid(h @ p["wc"] + p["bc"])
    z = jnp.concatenate([red, com, con], axis=1)
    d = jax.nn.sigmoid(z @ p["wd1"] + p["bd1"])
    rec = jax.nn.sigmoid(d @ p["wd2"] + p["bd2"])
    return red, com, rec


# --------------------------------- main --------------------------------------

if __name__ == "__main__":
    # args (small, but consistent with the module):
    view_num = 2
    view_shape = [20, 24]          # args.view_shape
    channels = [None, 64, 32]      # args.channels (channels[0] replaced per view)
    dim_feature = 16               # args.dim_feature
    sample_num = 12                # args.sample_num
    batch = 4                      # len(batch_idx)

    key = jax.random.PRNGKey(0)
    k_con, k_data, k_par = jax.random.split(key, 3)

    # self.feature_con ~ U(0, 1) of shape (sample_num, dim_feature)
    feature_con = jax.random.uniform(k_con, (sample_num, dim_feature),
                                     dtype=jnp.float32)
    batch_idx = jnp.array([0, 3, 5, 7], dtype=jnp.int32)

    data_keys = jax.random.split(k_data, view_num)
    data = [jax.random.normal(data_keys[v], (batch, view_shape[v]),
                              dtype=jnp.float32)
            for v in range(view_num)]

    par_keys = jax.random.split(k_par, view_num)
    view_params = [init_view_params(par_keys[v], view_shape[v],
                                    channels[1], channels[2], dim_feature)
                   for v in range(view_num)]
    fused = fuse_view_params(view_params, view_shape, dim_feature)

    out = mvfd_forward(data, batch_idx, feature_con, fused, view_shape,
                       dim_feature)
    jax.block_until_ready(out)

    # correctness check vs. plain-JAX f32 reference of the same math.
    # sigmoid is now exact (tanh form); the only kernel-side approximation is
    # bf16 MXU operands with f32 accumulation -> 1e-2 tolerance is comfortable
    # for values in (0, 1) at these K sizes.
    current_con = feature_con[batch_idx]
    for v in range(view_num):
        red_r, com_r, rec_r = _ref_view(data[v], current_con, view_params[v])
        np.testing.assert_allclose(np.asarray(out[0][v]), np.asarray(red_r),
                                   rtol=1e-2, atol=1e-2)
        np.testing.assert_allclose(np.asarray(out[1][v]), np.asarray(com_r),
                                   rtol=1e-2, atol=1e-2)
        np.testing.assert_allclose(np.asarray(out[2][v]), np.asarray(rec_r),
                                   rtol=1e-2, atol=1e-2)

    print("KERNEL_OK")
</pallas_src>

<mosaic_0001>
module attributes {stable_mosaic.version = 11 : i64} {
  func.func @_mvfd_fused_kernel(%arg0: i32, %arg1: memref<64x44xbf16, #tpu.memory_space<vmem>>, %arg2: memref<64x16xbf16, #tpu.memory_space<vmem>>, %arg3: memref<44x128xbf16, #tpu.memory_space<vmem>>, %arg4: memref<1x128xf32, #tpu.memory_space<vmem>>, %arg5: memref<128x64xbf16, #tpu.memory_space<vmem>>, %arg6: memref<1x64xf32, #tpu.memory_space<vmem>>, %arg7: memref<64x128xbf16, #tpu.memory_space<vmem>>, %arg8: memref<1x128xf32, #tpu.memory_space<vmem>>, %arg9: memref<128x128xbf16, #tpu.memory_space<vmem>>, %arg10: memref<16x128xbf16, #tpu.memory_space<vmem>>, %arg11: memref<1x128xf32, #tpu.memory_space<vmem>>, %arg12: memref<128x128xbf16, #tpu.memory_space<vmem>>, %arg13: memref<1x128xf32, #tpu.memory_space<vmem>>, %arg14: memref<64x256xf32, #tpu.memory_space<vmem>>) attributes {dimension_semantics = [#tpu.dimension_semantics<parallel>], iteration_bounds = array<i64: 2>, scalar_prefetch = 0 : i64, scratch_operands = 0 : i64, tpu.core_type = #tpu.core_type<tc>, window_params = [{transform_indices = @transform_0, window_bounds = array<i64: 64, 44>}, {transform_indices = @transform_1, window_bounds = array<i64: 64, 16>}, {pipeline_mode = #tpu.pipeline_mode<synchronous>, transform_indices = @transform_2, window_bounds = array<i64: 44, 128>}, {pipeline_mode = #tpu.pipeline_mode<synchronous>, transform_indices = @transform_3, window_bounds = array<i64: 1, 128>}, {pipeline_mode = #tpu.pipeline_mode<synchronous>, transform_indices = @transform_4, window_bounds = array<i64: 128, 64>}, {pipeline_mode = #tpu.pipeline_mode<synchronous>, transform_indices = @transform_5, window_bounds = array<i64: 1, 64>}, {pipeline_mode = #tpu.pipeline_mode<synchronous>, transform_indices = @transform_6, window_bounds = array<i64: 64, 128>}, {pipeline_mode = #tpu.pipeline_mode<synchronous>, transform_indices = @transform_7, window_bounds = array<i64: 1, 128>}, {pipeline_mode = #tpu.pipeline_mode<synchronous>, transform_indices = @transform_8, window_bounds = array<i64: 128, 128>}, {pipeline_mode = #tpu.pipeline_mode<synchronous>, transform_indices = @transform_9, window_bounds = array<i64: 16, 128>}, {pipeline_mode = #tpu.pipeline_mode<synchronous>, transform_indices = @transform_10, window_bounds = array<i64: 1, 128>}, {pipeline_mode = #tpu.pipeline_mode<synchronous>, transform_indices = @transform_11, window_bounds = array<i64: 128, 128>}, {pipeline_mode = #tpu.pipeline_mode<synchronous>, transform_indices = @transform_12, window_bounds = array<i64: 1, 128>}, {transform_indices = @transform_13, window_bounds = array<i64: 64, 256>}]} {
    %c0 = arith.constant 0 : index
    %c0_0 = arith.constant 0 : index
    %0 = vector.load %arg1[%c0, %c0_0] : memref<64x44xbf16, #tpu.memory_space<vmem>>, vector<64x44xbf16>
    %c0_1 = arith.constant 0 : index
    %c0_2 = arith.constant 0 : index
    %1 = vector.load %arg3[%c0_1, %c0_2] : memref<44x128xbf16, #tpu.memory_space<vmem>>, vector<44x128xbf16>
    %cst = arith.constant dense<0.000000e+00> : vector<64x128xf32>
    %2 = tpu.matmul %0, %1, %cst {dimension_numbers = #tpu.dot_dimension_numbers<[1], [0], [0], [1], [0, 0, 1, 1], [], []>} : vector<64x44xbf16>, vector<44x128xbf16>, vector<64x128xf32> -> vector<64x128xf32>
    %c0_3 = arith.constant 0 : index
    %c0_4 = arith.constant 0 : index
    %3 = vector.load %arg4[%c0_3, %c0_4] : memref<1x128xf32, #tpu.memory_space<vmem>>, vector<1x128xf32>
    %4 = vector.broadcast %3 : vector<1x128xf32> to vector<64x128xf32>
    %5 = arith.addf %2, %4 : vector<64x128xf32>
    %cst_5 = arith.constant 5.000000e-01 : f32
    %6 = vector.broadcast %cst_5 : f32 to vector<64x128xf32>
    %7 = arith.mulf %6, %5 : vector<64x128xf32>
    %8 = math.tanh %7 : vector<64x128xf32>
    %cst_6 = arith.constant 5.000000e-01 : f32
    %9 = vector.broadcast %cst_6 : f32 to vector<64x128xf32>
    %10 = arith.mulf %9, %8 : vector<64x128xf32>
    %cst_7 = arith.constant 5.000000e-01 : f32
    %11 = vector.broadcast %cst_7 : f32 to vector<64x128xf32>
    %12 = arith.addf %10, %11 : vector<64x128xf32>
    %13 = arith.truncf %12 : vector<64x128xf32> to vector<64x128xbf16>
    %c0_8 = arith.constant 0 : index
    %c0_9 = arith.constant 0 : index
    %14 = vector.load %arg5[%c0_8, %c0_9] : memref<128x64xbf16, #tpu.memory_space<vmem>>, vector<128x64xbf16>
    %cst_10 = arith.constant dense<0.000000e+00> : vector<64x64xf32>
    %15 = tpu.matmul %13, %14, %cst_10 {dimension_numbers = #tpu.dot_dimension_numbers<[1], [0], [0], [1], [0, 0, 1, 1], [], []>} : vector<64x128xbf16>, vector<128x64xbf16>, vector<64x64xf32> -> vector<64x64xf32>
    %c0_11 = arith.constant 0 : index
    %c0_12 = arith.constant 0 : index
    %16 = vector.load %arg6[%c0_11, %c0_12] : memref<1x64xf32, #tpu.memory_space<vmem>>, vector<1x64xf32>
    %17 = vector.broadcast %16 : vector<1x64xf32> to vector<64x64xf32>
    %18 = arith.addf %15, %17 : vector<64x64xf32>
    %cst_13 = arith.constant 5.000000e-01 : f32
    %19 = vector.broadcast %cst_13 : f32 to vector<64x64xf32>
    %20 = arith.mulf %19, %18 : vector<64x64xf32>
    %21 = math.tanh %20 : vector<64x64xf32>
    %cst_14 = arith.constant 5.000000e-01 : f32
    %22 = vector.broadcast %cst_14 : f32 to vector<64x64xf32>
    %23 = arith.mulf %22, %21 : vector<64x64xf32>
    %cst_15 = arith.constant 5.000000e-01 : f32
    %24 = vector.broadcast %cst_15 : f32 to vector<64x64xf32>
    %25 = arith.addf %23, %24 : vector<64x64xf32>
    %26 = arith.truncf %25 : vector<64x64xf32> to vector<64x64xbf16>
    %c0_16 = arith.constant 0 : index
    %c0_17 = arith.constant 0 : index
    %27 = vector.load %arg7[%c0_16, %c0_17] : memref<64x128xbf16, #tpu.memory_space<vmem>>, vector<64x128xbf16>
    %cst_18 = arith.constant dense<0.000000e+00> : vector<64x128xf32>
    %28 = tpu.matmul %26, %27, %cst_18 {dimension_numbers = #tpu.dot_dimension_numbers<[1], [0], [0], [1], [0, 0, 1, 1], [], []>} : vector<64x64xbf16>, vector<64x128xbf16>, vector<64x128xf32> -> vector<64x128xf32>
    %c0_19 = arith.constant 0 : index
    %c0_20 = arith.constant 0 : index
    %29 = vector.load %arg8[%c0_19, %c0_20] : memref<1x128xf32, #tpu.memory_space<vmem>>, vector<1x128xf32>
    %30 = vector.broadcast %29 : vector<1x128xf32> to vector<64x128xf32>
    %31 = arith.addf %28, %30 : vector<64x128xf32>
    %cst_21 = arith.constant 5.000000e-01 : f32
    %32 = vector.broadcast %cst_21 : f32 to vector<64x128xf32>
    %33 = arith.mulf %32, %31 : vector<64x128xf32>
    %34 = math.tanh %33 : vector<64x128xf32>
    %cst_22 = arith.constant 5.000000e-01 : f32
    %35 = vector.broadcast %cst_22 : f32 to vector<64x128xf32>
    %36 = arith.mulf %35, %34 : vector<64x128xf32>
    %cst_23 = arith.constant 5.000000e-01 : f32
    %37 = vector.broadcast %cst_23 : f32 to vector<64x128xf32>
    %38 = arith.addf %36, %37 : vector<64x128xf32>
    %39 = arith.truncf %38 : vector<64x128xf32> to vector<64x128xbf16>
    %c0_24 = arith.constant 0 : index
    %c0_25 = arith.constant 0 : index
    %40 = vector.load %arg9[%c0_24, %c0_25] : memref<128x128xbf16, #tpu.memory_space<vmem>>, vector<128x128xbf16>
    %cst_26 = arith.constant dense<0.000000e+00> : vector<64x128xf32>
    %41 = tpu.matmul %39, %40, %cst_26 {dimension_numbers = #tpu.dot_dimension_numbers<[1], [0], [0], [1], [0, 0, 1, 1], [], []>} : vector<64x128xbf16>, vector<128x128xbf16>, vector<64x128xf32> -> vector<64x128xf32>
    %c0_27 = arith.constant 0 : index
    %c0_28 = arith.constant 0 : index
    %42 = vector.load %arg2[%c0_27, %c0_28] : memref<64x16xbf16, #tpu.memory_space<vmem>>, vector<64x16xbf16>
    %c0_29 = arith.constant 0 : index
    %c0_30 = arith.constant 0 : index
    %43 = vector.load %arg10[%c0_29, %c0_30] : memref<16x128xbf16, #tpu.memory_space<vmem>>, vector<16x128xbf16>
    %cst_31 = arith.constant dense<0.000000e+00> : vector<64x128xf32>
    %44 = tpu.matmul %42, %43, %cst_31 {dimension_numbers = #tpu.dot_dimension_numbers<[1], [0], [0], [1], [0, 0, 1, 1], [], []>} : vector<64x16xbf16>, vector<16x128xbf16>, vector<64x128xf32> -> vector<64x128xf32>
    %45 = arith.addf %41, %44 : vector<64x128xf32>
    %c0_32 = arith.constant 0 : index
    %c0_33 = arith.constant 0 : index
    %46 = vector.load %arg11[%c0_32, %c0_33] : memref<1x128xf32, #tpu.memory_space<vmem>>, vector<1x128xf32>
    %47 = vector.broadcast %46 : vector<1x128xf32> to vector<64x128xf32>
    %48 = arith.addf %45, %47 : vector<64x128xf32>
    %cst_34 = arith.constant 5.000000e-01 : f32
    %49 = vector.broadcast %cst_34 : f32 to vector<64x128xf32>
    %50 = arith.mulf %49, %48 : vector<64x128xf32>
    %51 = math.tanh %50 : vector<64x128xf32>
    %cst_35 = arith.constant 5.000000e-01 : f32
    %52 = vector.broadcast %cst_35 : f32 to vector<64x128xf32>
    %53 = arith.mulf %52, %51 : vector<64x128xf32>
    %cst_36 = arith.constant 5.000000e-01 : f32
    %54 = vector.broadcast %cst_36 : f32 to vector<64x128xf32>
    %55 = arith.addf %53, %54 : vector<64x128xf32>
    %56 = arith.truncf %55 : vector<64x128xf32> to vector<64x128xbf16>
    %c0_37 = arith.constant 0 : index
    %c0_38 = arith.constant 0 : index
    %57 = vector.load %arg12[%c0_37, %c0_38] : memref<128x128xbf16, #tpu.memory_space<vmem>>, vector<128x128xbf16>
    %cst_39 = arith.constant dense<0.000000e+00> : vector<64x128xf32>
    %58 = tpu.matmul %56, %57, %cst_39 {dimension_numbers = #tpu.dot_dimension_numbers<[1], [0], [0], [1], [0, 0, 1, 1], [], []>} : vector<64x128xbf16>, vector<128x128xbf16>, vector<64x128xf32> -> vector<64x128xf32>
    %c0_40 = arith.constant 0 : index
    %c0_41 = arith.constant 0 : index
    %59 = vector.load %arg13[%c0_40, %c0_41] : memref<1x128xf32, #tpu.memory_space<vmem>>, vector<1x128xf32>
    %60 = vector.broadcast %59 : vector<1x128xf32> to vector<64x128xf32>
    %61 = arith.addf %58, %60 : vector<64x128xf32>
    %cst_42 = arith.constant 5.000000e-01 : f32
    %62 = vector.broadcast %cst_42 : f32 to vector<64x128xf32>
    %63 = arith.mulf %62, %61 : vector<64x128xf32>
    %64 = math.tanh %63 : vector<64x128xf32>
    %cst_43 = arith.constant 5.000000e-01 : f32
    %65 = vector.broadcast %cst_43 : f32 to vector<64x128xf32>
    %66 = arith.mulf %65, %64 : vector<64x128xf32>
    %cst_44 = arith.constant 5.000000e-01 : f32
    %67 = vector.broadcast %cst_44 : f32 to vector<64x128xf32>
    %68 = arith.addf %66, %67 : vector<64x128xf32>
    %c0_45 = arith.constant 0 : index
    %c0_46 = arith.constant 0 : index
    %69 = vector.load %arg14[%c0_45, %c0_46] : memref<64x256xf32, #tpu.memory_space<vmem>>, vector<64x128xf32>
    tpu.vector_store %arg14[%c0_45, %c0_46], %38 {strides = array<i32>} : memref<64x256xf32, #tpu.memory_space<vmem>>, vector<64x128xf32>,
    %c0_47 = arith.constant 0 : index
    %c128 = arith.constant 128 : index
    %70 = vector.load %arg14[%c0_47, %c128] : memref<64x256xf32, #tpu.memory_space<vmem>>, vector<64x128xf32>
    tpu.vector_store %arg14[%c0_47, %c128], %68 {strides = array<i32>} : memref<64x256xf32, #tpu.memory_space<vmem>>, vector<64x128xf32>,
    return
  }
  func.func @transform_0(%arg0: i32) -> (i32, i32) {
    %c0_i32 = arith.constant 0 : i32
    %c0_i32_0 = arith.constant 0 : i32
    return %arg0, %c0_i32 : i32, i32
  }
  func.func @transform_1(%arg0: i32) -> (i32, i32) {
    %c0_i32 = arith.constant 0 : i32
    %c0_i32_0 = arith.constant 0 : i32
    return %arg0, %c0_i32 : i32, i32
  }
  func.func @transform_2(%arg0: i32) -> (i32, i32) {
    %c0_i32 = arith.constant 0 : i32
    %c0_i32_0 = arith.constant 0 : i32
    %c0_i32_1 = arith.constant 0 : i32
    return %c0_i32, %c0_i32_0 : i32, i32
  }
  func.func @transform_3(%arg0: i32) -> (i32, i32) {
    %c0_i32 = arith.constant 0 : i32
    %c0_i32_0 = arith.constant 0 : i32
    %c0_i32_1 = arith.constant 0 : i32
    return %c0_i32, %c0_i32_0 : i32, i32
  }
  func.func @transform_4(%arg0: i32) -> (i32, i32) {
    %c0_i32 = arith.constant 0 : i32
    %c0_i32_0 = arith.constant 0 : i32
    %c0_i32_1 = arith.constant 0 : i32
    return %c0_i32, %c0_i32_0 : i32, i32
  }
  func.func @transform_5(%arg0: i32) -> (i32, i32) {
    %c0_i32 = arith.constant 0 : i32
    %c0_i32_0 = arith.constant 0 : i32
    %c0_i32_1 = arith.constant 0 : i32
    return %c0_i32, %c0_i32_0 : i32, i32
  }
  func.func @transform_6(%arg0: i32) -> (i32, i32) {
    %c0_i32 = arith.constant 0 : i32
    %c0_i32_0 = arith.constant 0 : i32
    %c0_i32_1 = arith.constant 0 : i32
    return %c0_i32, %c0_i32_0 : i32, i32
  }
  func.func @transform_7(%arg0: i32) -> (i32, i32) {
    %c0_i32 = arith.constant 0 : i32
    %c0_i32_0 = arith.constant 0 : i32
    %c0_i32_1 = arith.constant 0 : i32
    return %c0_i32, %c0_i32_0 : i32, i32
  }
  func.func @transform_8(%arg0: i32) -> (i32, i32) {
    %c0_i32 = arith.constant 0 : i32
    %c0_i32_0 = arith.constant 0 : i32
    %c0_i32_1 = arith.constant 0 : i32
    return %c0_i32, %c0_i32_0 : i32, i32
  }
  func.func @transform_9(%arg0: i32) -> (i32, i32) {
    %c0_i32 = arith.constant 0 : i32
    %c0_i32_0 = arith.constant 0 : i32
    %c0_i32_1 = arith.constant 0 : i32
    return %c0_i32, %c0_i32_0 : i32, i32
  }
  func.func @transform_10(%arg0: i32) -> (i32, i32) {
    %c0_i32 = arith.constant 0 : i32
    %c0_i32_0 = arith.constant 0 : i32
    %c0_i32_1 = arith.constant 0 : i32
    return %c0_i32, %c0_i32_0 : i32, i32
  }
  func.func @transform_11(%arg0: i32) -> (i32, i32) {
    %c0_i32 = arith.constant 0 : i32
    %c0_i32_0 = arith.constant 0 : i32
    %c0_i32_1 = arith.constant 0 : i32
    return %c0_i32, %c0_i32_0 : i32, i32
  }
  func.func @transform_12(%arg0: i32) -> (i32, i32) {
    %c0_i32 = arith.constant 0 : i32
    %c0_i32_0 = arith.constant 0 : i32
    %c0_i32_1 = arith.constant 0 : i32
    return %c0_i32, %c0_i32_0 : i32, i32
  }
  func.func @transform_13(%arg0: i32) -> (i32, i32) {
    %c0_i32 = arith.constant 0 : i32
    %c0_i32_0 = arith.constant 0 : i32
    return %arg0, %c0_i32 : i32, i32
  }
}

</mosaic_0001>

<llo_original>
// kernel: tpu_custom_call.1
$region0: #{tpu_custom_call.1}
  #allocation0 [shape = 'u32[]', space=smem, size = 0x4, offset = 0x4, fixed_abs, tag = 'smem constant byte address 0x4 - core index']
  #allocation1 [shape = 'u32[72,128]{1,0:T(1,128)}', space=vmem, size = 0x9000, scoped, tag = 'internal scratch']
  %s0 = inlined_call_operand.vmem [shape: bf16[128,44], index: 0, kind: input, shape index: {}]
  %s1 = inlined_call_operand.vmem [shape: bf16[128,16], index: 1, kind: input, shape index: {}]
  %s2 = inlined_call_operand.vmem [shape: bf16[44,128], index: 2, kind: input, shape index: {}]
  %s3 = inlined_call_operand.vmem [shape: f32[1,128], index: 3, kind: input, shape index: {}]
  %s4 = inlined_call_operand.vmem [shape: bf16[128,64], index: 4, kind: input, shape index: {}]
  %s5 = inlined_call_operand.vmem [shape: f32[1,64], index: 5, kind: input, shape index: {}]
  %s6 = inlined_call_operand.vmem [shape: bf16[64,128], index: 6, kind: input, shape index: {}]
  %s7 = inlined_call_operand.vmem [shape: f32[1,128], index: 7, kind: input, shape index: {}]
  %s8 = inlined_call_operand.vmem [shape: bf16[128,128], index: 8, kind: input, shape index: {}]
  %s9 = inlined_call_operand.vmem [shape: bf16[16,128], index: 9, kind: input, shape index: {}]
  %s10 = inlined_call_operand.vmem [shape: f32[1,128], index: 10, kind: input, shape index: {}]
  %s11 = inlined_call_operand.vmem [shape: bf16[128,128], index: 11, kind: input, shape index: {}]
  %s12 = inlined_call_operand.vmem [shape: f32[1,128], index: 12, kind: input, shape index: {}]
  %s13 = inlined_call_operand.hbm [shape: f32[128,256], index: 13, kind: output, shape index: {}]
  %s14 = sld [smem:[#allocation0]]
  $region85: #{tpu_custom_call.1} parent=0
    _
  %s16 = ssub.s32 1, %s14
  %s17 = scalar_select 0, %s16, %s14
  $region1: #{tpu_custom_call.1} parent=0
    #allocation2 [shape = 'u8[131072]{0}', space=vmem, size = 0x20000, scoped, tag = 'output window, operand 0']
    #allocation3 [shape = 's32[2]{0}', space=sflag, size = 0x8, scoped, tag = 'scoped memory for tpu_custom_call.1']
    %18 = vsyncpa [#allocation3], 0
    %s19 = scalar_lea.sflag [#allocation3], 1
    %20 = vsyncpa %s19, 0
    loop: start=0, step=1, limit=4
    $region2: #{tpu_custom_call.1} parent=1 // loop_pre_header
      _
    $region3: #{tpu_custom_call.1} parent=1 // loop_header
      %s22 = sphi 0, %s26
      %p23 = scmp.ge.s32.totalorder %s22, 4
      %s32 = sphi 0, %s34
      %s35 = sphi 0, %s32
      %s36 = sphi 0, %s35
      %s52 = sphi 0, %s36
      %s58 = sphi 0, %s60
      %s61 = sphi 0, %s58
      %s62 = sphi 0, %s61
      %s78 = sphi 0, %s62
      %s82 = sphi 0, %s82
      %s84 = sphi 0, %s82
      %s85 = sphi 0, %s84
      %s99 = sphi 0, %s85
      %s103 = sphi 0, %s103
      %s105 = sphi 0, %s103
      %s106 = sphi 0, %s105
      %s120 = sphi 0, %s106
      %s124 = sphi 0, %s124
      %s126 = sphi 0, %s124
      %s127 = sphi 0, %s126
      %s141 = sphi 0, %s127
      %s145 = sphi 0, %s145
      %s147 = sphi 0, %s145
      %s148 = sphi 0, %s147
      %s162 = sphi 0, %s148
      %s166 = sphi 0, %s166
      %s168 = sphi 0, %s166
      %s169 = sphi 0, %s168
      %s183 = sphi 0, %s169
      %s187 = sphi 0, %s187
      %s189 = sphi 0, %s187
      %s190 = sphi 0, %s189
      %s204 = sphi 0, %s190
      %s208 = sphi 0, %s208
      %s210 = sphi 0, %s208
      %s211 = sphi 0, %s210
      %s225 = sphi 0, %s211
      %s229 = sphi 0, %s229
      %s231 = sphi 0, %s229
      %s232 = sphi 0, %s231
      %s246 = sphi 0, %s232
      %s250 = sphi 0, %s250
      %s252 = sphi 0, %s250
      %s253 = sphi 0, %s252
      %s267 = sphi 0, %s253
      %s271 = sphi 0, %s271
      %s273 = sphi 0, %s271
      %s274 = sphi 0, %s273
      %s288 = sphi 0, %s274
      %s292 = sphi 0, %s292
      %s294 = sphi 0, %s292
      %s295 = sphi 0, %s294
      %s309 = sphi 0, %s295
      %s315 = sphi 0, %s317
      %s318 = sphi 0, %s315
      %s319 = sphi 0, %s318
      %s335 = sphi 0, %s319
    $region4: #{tpu_custom_call.1} parent=1 // loop_header_branch
      %25 = sbr.rel (%p23) target = $region8
    $region5: #{tpu_custom_call.1} parent=1 // loop_body
      %s27 = ssub.s32 %s22, 1
      %s28 = ssub.s32 %s22, 2
      %s29 = sadd.s32 %s22, 1
      %s30 = ssub.s32 %s22, %s29
      %p31 = scmp.eq.s32.totalorder %s30, 0
      %s33 = sadd.s32 %s32, 1
      %s34 = scalar_select %p31, %s32, %s33
      %p37 = pneg %p31
      %p38 = scmp.eq.s32.totalorder %s22, 1
      %p39 = por %p37, %p38
      %p40 = scmp.ne.s32.totalorder %s32, %s35
      %p41 = scmp.eq.s32.totalorder %s22, 0
      %p42 = por %p40, %p41
      %p43 = scmp.ne.s32.totalorder %s32, %s35
      %p44 = scmp.eq.s32.totalorder %s27, 1
      %p45 = por %p43, %p44
      %p46 = scmp.ne.s32.totalorder %s35, %s36
      %p47 = scmp.eq.s32.totalorder %s27, 0
      %p48 = por %p46, %p47
      %p49 = scmp.ne.s32.totalorder %s35, %s36
      %p50 = scmp.eq.s32.totalorder %s28, 1
      %p51 = por %p49, %p50
      %p53 = scmp.ne.s32.totalorder %s36, %s52
      %p54 = scmp.eq.s32.totalorder %s28, 0
      %p55 = por %p53, %p54
      %s56 = ssub.s32 %s22, %s29
      %p57 = scmp.eq.s32.totalorder %s56, 0
      %s59 = sadd.s32 %s58, 1
      %s60 = scalar_select %p57, %s58, %s59
      %p63 = pneg %p57
      %p64 = scmp.eq.s32.totalorder %s22, 1
      %p65 = por %p63, %p64
      %p66 = scmp.ne.s32.totalorder %s58, %s61
      %p67 = scmp.eq.s32.totalorder %s22, 0
      %p68 = por %p66, %p67
      %p69 = scmp.ne.s32.totalorder %s58, %s61
      %p70 = scmp.eq.s32.totalorder %s27, 1
      %p71 = por %p69, %p70
      %p72 = scmp.ne.s32.totalorder %s61, %s62
      %p73 = scmp.eq.s32.totalorder %s27, 0
      %p74 = por %p72, %p73
      %p75 = scmp.ne.s32.totalorder %s61, %s62
      %p76 = scmp.eq.s32.totalorder %s28, 1
      %p77 = por %p75, %p76
      %p79 = scmp.ne.s32.totalorder %s62, %s78
      %p80 = scmp.eq.s32.totalorder %s28, 0
      %p81 = por %p79, %p80
      %s83 = sadd.s32 %s82, 1
      %p86 = scmp.eq.s32.totalorder %s22, 1
      %p87 = scmp.ne.s32.totalorder %s82, %s84
      %p88 = scmp.eq.s32.totalorder %s22, 0
      %p89 = por %p87, %p88
      %p90 = scmp.ne.s32.totalorder %s82, %s84
      %p91 = scmp.eq.s32.totalorder %s27, 1
      %p92 = por %p90, %p91
      %p93 = scmp.ne.s32.totalorder %s84, %s85
      %p94 = scmp.eq.s32.totalorder %s27, 0
      %p95 = por %p93, %p94
      %p96 = scmp.ne.s32.totalorder %s84, %s85
      %p97 = scmp.eq.s32.totalorder %s28, 1
      %p98 = por %p96, %p97
      %p100 = scmp.ne.s32.totalorder %s85, %s99
      %p101 = scmp.eq.s32.totalorder %s28, 0
      %p102 = por %p100, %p101
      %s104 = sadd.s32 %s103, 1
      %p107 = scmp.eq.s32.totalorder %s22, 1
      %p108 = scmp.ne.s32.totalorder %s103, %s105
      %p109 = scmp.eq.s32.totalorder %s22, 0
      %p110 = por %p108, %p109
      %p111 = scmp.ne.s32.totalorder %s103, %s105
      %p112 = scmp.eq.s32.totalorder %s27, 1
      %p113 = por %p111, %p112
      %p114 = scmp.ne.s32.totalorder %s105, %s106
      %p115 = scmp.eq.s32.totalorder %s27, 0
      %p116 = por %p114, %p115
      %p117 = scmp.ne.s32.totalorder %s105, %s106
      %p118 = scmp.eq.s32.totalorder %s28, 1
      %p119 = por %p117, %p118
      %p121 = scmp.ne.s32.totalorder %s106, %s120
      %p122 = scmp.eq.s32.totalorder %s28, 0
      %p123 = por %p121, %p122
      %s125 = sadd.s32 %s124, 1
      %p128 = scmp.eq.s32.totalorder %s22, 1
      %p129 = scmp.ne.s32.totalorder %s124, %s126
      %p130 = scmp.eq.s32.totalorder %s22, 0
      %p131 = por %p129, %p130
      %p132 = scmp.ne.s32.totalorder %s124, %s126
      %p133 = scmp.eq.s32.totalorder %s27, 1
      %p134 = por %p132, %p133
      %p135 = scmp.ne.s32.totalorder %s126, %s127
      %p136 = scmp.eq.s32.totalorder %s27, 0
      %p137 = por %p135, %p136
      %p138 = scmp.ne.s32.totalorder %s126, %s127
      %p139 = scmp.eq.s32.totalorder %s28, 1
      %p140 = por %p138, %p139
      %p142 = scmp.ne.s32.totalorder %s127, %s141
      %p143 = scmp.eq.s32.totalorder %s28, 0
      %p144 = por %p142, %p143
      %s146 = sadd.s32 %s145, 1
      %p149 = scmp.eq.s32.totalorder %s22, 1
      %p150 = scmp.ne.s32.totalorder %s145, %s147
      %p151 = scmp.eq.s32.totalorder %s22, 0
      %p152 = por %p150, %p151
      %p153 = scmp.ne.s32.totalorder %s145, %s147
      %p154 = scmp.eq.s32.totalorder %s27, 1
      %p155 = por %p153, %p154
      %p156 = scmp.ne.s32.totalorder %s147, %s148
      %p157 = scmp.eq.s32.totalorder %s27, 0
      %p158 = por %p156, %p157
      %p159 = scmp.ne.s32.totalorder %s147, %s148
      %p160 = scmp.eq.s32.totalorder %s28, 1
      %p161 = por %p159, %p160
      %p163 = scmp.ne.s32.totalorder %s148, %s162
      %p164 = scmp.eq.s32.totalorder %s28, 0
      %p165 = por %p163, %p164
      %s167 = sadd.s32 %s166, 1
      %p170 = scmp.eq.s32.totalorder %s22, 1
      %p171 = scmp.ne.s32.totalorder %s166, %s168
      %p172 = scmp.eq.s32.totalorder %s22, 0
      %p173 = por %p171, %p172
      %p174 = scmp.ne.s32.totalorder %s166, %s168
      %p175 = scmp.eq.s32.totalorder %s27, 1
      %p176 = por %p174, %p175
      %p177 = scmp.ne.s32.totalorder %s168, %s169
      %p178 = scmp.eq.s32.totalorder %s27, 0
      %p179 = por %p177, %p178
      %p180 = scmp.ne.s32.totalorder %s168, %s169
      %p181 = scmp.eq.s32.totalorder %s28, 1
      %p182 = por %p180, %p181
      %p184 = scmp.ne.s32.totalorder %s169, %s183
      %p185 = scmp.eq.s32.totalorder %s28, 0
      %p186 = por %p184, %p185
      %s188 = sadd.s32 %s187, 1
      %p191 = scmp.eq.s32.totalorder %s22, 1
      %p192 = scmp.ne.s32.totalorder %s187, %s189
      %p193 = scmp.eq.s32.totalorder %s22, 0
      %p194 = por %p192, %p193
      %p195 = scmp.ne.s32.totalorder %s187, %s189
      %p196 = scmp.eq.s32.totalorder %s27, 1
      %p197 = por %p195, %p196
      %p198 = scmp.ne.s32.totalorder %s189, %s190
      %p199 = scmp.eq.s32.totalorder %s27, 0
      %p200 = por %p198, %p199
      %p201 = scmp.ne.s32.totalorder %s189, %s190
      %p202 = scmp.eq.s32.totalorder %s28, 1
      %p203 = por %p201, %p202
      %p205 = scmp.ne.s32.totalorder %s190, %s204
      %p206 = scmp.eq.s32.totalorder %s28, 0
      %p207 = por %p205, %p206
      %s209 = sadd.s32 %s208, 1
      %p212 = scmp.eq.s32.totalorder %s22, 1
      %p213 = scmp.ne.s32.totalorder %s208, %s210
      %p214 = scmp.eq.s32.totalorder %s22, 0
      %p215 = por %p213, %p214
      %p216 = scmp.ne.s32.totalorder %s208, %s210
      %p217 = scmp.eq.s32.totalorder %s27, 1
      %p218 = por %p216, %p217
      %p219 = scmp.ne.s32.totalorder %s210, %s211
      %p220 = scmp.eq.s32.totalorder %s27, 0
      %p221 = por %p219, %p220
      %p222 = scmp.ne.s32.totalorder %s210, %s211
      %p223 = scmp.eq.s32.totalorder %s28, 1
      %p224 = por %p222, %p223
      %p226 = scmp.ne.s32.totalorder %s211, %s225
      %p227 = scmp.eq.s32.totalorder %s28, 0
      %p228 = por %p226, %p227
      %s230 = sadd.s32 %s229, 1
      %p233 = scmp.eq.s32.totalorder %s22, 1
      %p234 = scmp.ne.s32.totalorder %s229, %s231
      %p235 = scmp.eq.s32.totalorder %s22, 0
      %p236 = por %p234, %p235
      %p237 = scmp.ne.s32.totalorder %s229, %s231
      %p238 = scmp.eq.s32.totalorder %s27, 1
      %p239 = por %p237, %p238
      %p240 = scmp.ne.s32.totalorder %s231, %s232
      %p241 = scmp.eq.s32.totalorder %s27, 0
      %p242 = por %p240, %p241
      %p243 = scmp.ne.s32.totalorder %s231, %s232
      %p244 = scmp.eq.s32.totalorder %s28, 1
      %p245 = por %p243, %p244
      %p247 = scmp.ne.s32.totalorder %s232, %s246
      %p248 = scmp.eq.s32.totalorder %s28, 0
      %p249 = por %p247, %p248
      %s251 = sadd.s32 %s250, 1
      %p254 = scmp.eq.s32.totalorder %s22, 1
      %p255 = scmp.ne.s32.totalorder %s250, %s252
      %p256 = scmp.eq.s32.totalorder %s22, 0
      %p257 = por %p255, %p256
      %p258 = scmp.ne.s32.totalorder %s250, %s252
      %p259 = scmp.eq.s32.totalorder %s27, 1
      %p260 = por %p258, %p259
      %p261 = scmp.ne.s32.totalorder %s252, %s253
      %p262 = scmp.eq.s32.totalorder %s27, 0
      %p263 = por %p261, %p262
      %p264 = scmp.ne.s32.totalorder %s252, %s253
      %p265 = scmp.eq.s32.totalorder %s28, 1
      %p266 = por %p264, %p265
      %p268 = scmp.ne.s32.totalorder %s253, %s267
      %p269 = scmp.eq.s32.totalorder %s28, 0
      %p270 = por %p268, %p269
      %s272 = sadd.s32 %s271, 1
      %p275 = scmp.eq.s32.totalorder %s22, 1
      %p276 = scmp.ne.s32.totalorder %s271, %s273
      %p277 = scmp.eq.s32.totalorder %s22, 0
      %p278 = por %p276, %p277
      %p279 = scmp.ne.s32.totalorder %s271, %s273
      %p280 = scmp.eq.s32.totalorder %s27, 1
      %p281 = por %p279, %p280
      %p282 = scmp.ne.s32.totalorder %s273, %s274
      %p283 = scmp.eq.s32.totalorder %s27, 0
      %p284 = por %p282, %p283
      %p285 = scmp.ne.s32.totalorder %s273, %s274
      %p286 = scmp.eq.s32.totalorder %s28, 1
      %p287 = por %p285, %p286
      %p289 = scmp.ne.s32.totalorder %s274, %s288
      %p290 = scmp.eq.s32.totalorder %s28, 0
      %p291 = por %p289, %p290
      %s293 = sadd.s32 %s292, 1
      %p296 = scmp.eq.s32.totalorder %s22, 1
      %p297 = scmp.ne.s32.totalorder %s292, %s294
      %p298 = scmp.eq.s32.totalorder %s22, 0
      %p299 = por %p297, %p298
      %p300 = scmp.ne.s32.totalorder %s292, %s294
      %p301 = scmp.eq.s32.totalorder %s27, 1
      %p302 = por %p300, %p301
      %p303 = scmp.ne.s32.totalorder %s294, %s295
      %p304 = scmp.eq.s32.totalorder %s27, 0
      %p305 = por %p303, %p304
      %p306 = scmp.ne.s32.totalorder %s294, %s295
      %p307 = scmp.eq.s32.totalorder %s28, 1
      %p308 = por %p306, %p307
      %p310 = scmp.ne.s32.totalorder %s295, %s309
      %p311 = scmp.eq.s32.totalorder %s28, 0
      %p312 = por %p310, %p311
      %s313 = ssub.s32 %s22, %s29
      %p314 = scmp.eq.s32.totalorder %s313, 0
      %s316 = sadd.s32 %s315, 1
      %s317 = scalar_select %p314, %s315, %s316
      %p320 = pneg %p314
      %p321 = scmp.eq.s32.totalorder %s22, 1
      %p322 = por %p320, %p321
      %p323 = scmp.ne.s32.totalorder %s315, %s318
      %p324 = scmp.eq.s32.totalorder %s22, 0
      %p325 = por %p323, %p324
      %p326 = scmp.ne.s32.totalorder %s315, %s318
      %p327 = scmp.eq.s32.totalorder %s27, 1
      %p328 = por %p326, %p327
      %p329 = scmp.ne.s32.totalorder %s318, %s319
      %p330 = scmp.eq.s32.totalorder %s27, 0
      %p331 = por %p329, %p330
      %p332 = scmp.ne.s32.totalorder %s318, %s319
      %p333 = scmp.eq.s32.totalorder %s28, 1
      %p334 = por %p332, %p333
      %p336 = scmp.ne.s32.totalorder %s319, %s335
      %p337 = scmp.eq.s32.totalorder %s28, 0
      %p338 = por %p336, %p337
      %p339 = scmp.le.s32.totalorder 1, %s22
      %p340 = scmp.lt.s32.totalorder %s22, 3
      %p341 = pnand %p339, %p340
      %p342 = pneg %p341
      // Predicated region
      $region9: #{tpu_custom_call.1} parent=5 // pred_check
        _
      $region10: #{tpu_custom_call.1} parent=5 // pred_check_branch
        %344 = sbr.rel (%p341) target = $region12
      $region11: #{tpu_custom_call.1} parent=5 // pred_region
        %s345 = ssub.s32 %s22, 1
        // Predicated region
        $region13: #{tpu_custom_call.1} parent=11 // pred_check
          %p346 = pneg %p95
        $region14: #{tpu_custom_call.1} parent=11 // pred_check_branch
          %348 = sbr.rel (%p346) target = $region16
        $region15: #{tpu_custom_call.1} parent=11 // pred_region
          _
        $region16: #{tpu_custom_call.1} parent=11 // pred_fallthru
          _
        // Predicated region
        $region17: #{tpu_custom_call.1} parent=11 // pred_check
          %p349 = pneg %p116
        $region18: #{tpu_custom_call.1} parent=11 // pred_check_branch
          %351 = sbr.rel (%p349) target = $region20
        $region19: #{tpu_custom_call.1} parent=11 // pred_region
          _
        $region20: #{tpu_custom_call.1} parent=11 // pred_fallthru
          _
        // Predicated region
        $region21: #{tpu_custom_call.1} parent=11 // pred_check
          %p352 = pneg %p137
        $region22: #{tpu_custom_call.1} parent=11 // pred_check_branch
          %354 = sbr.rel (%p352) target = $region24
        $region23: #{tpu_custom_call.1} parent=11 // pred_region
          _
        $region24: #{tpu_custom_call.1} parent=11 // pred_fallthru
          _
        // Predicated region
        $region25: #{tpu_custom_call.1} parent=11 // pred_check
          %p355 = pneg %p158
        $region26: #{tpu_custom_call.1} parent=11 // pred_check_branch
          %357 = sbr.rel (%p355) target = $region28
        $region27: #{tpu_custom_call.1} parent=11 // pred_region
          _
        $region28: #{tpu_custom_call.1} parent=11 // pred_fallthru
          _
        // Predicated region
        $region29: #{tpu_custom_call.1} parent=11 // pred_check
          %p358 = pneg %p179
        $region30: #{tpu_custom_call.1} parent=11 // pred_check_branch
          %360 = sbr.rel (%p358) target = $region32
        $region31: #{tpu_custom_call.1} parent=11 // pred_region
          _
        $region32: #{tpu_custom_call.1} parent=11 // pred_fallthru
          _
        // Predicated region
        $region33: #{tpu_custom_call.1} parent=11 // pred_check
          %p361 = pneg %p200
        $region34: #{tpu_custom_call.1} parent=11 // pred_check_branch
          %363 = sbr.rel (%p361) target = $region36
        $region35: #{tpu_custom_call.1} parent=11 // pred_region
          _
        $region36: #{tpu_custom_call.1} parent=11 // pred_fallthru
          _
        // Predicated region
        $region37: #{tpu_custom_call.1} parent=11 // pred_check
          %p364 = pneg %p221
        $region38: #{tpu_custom_call.1} parent=11 // pred_check_branch
          %366 = sbr.rel (%p364) target = $region40
        $region39: #{tpu_custom_call.1} parent=11 // pred_region
          _
        $region40: #{tpu_custom_call.1} parent=11 // pred_fallthru
          _
        // Predicated region
        $region41: #{tpu_custom_call.1} parent=11 // pred_check
          %p367 = pneg %p242
        $region42: #{tpu_custom_call.1} parent=11 // pred_check_branch
          %369 = sbr.rel (%p367) target = $region44
        $region43: #{tpu_custom_call.1} parent=11 // pred_region
          _
        $region44: #{tpu_custom_call.1} parent=11 // pred_fallthru
          _
        // Predicated region
        $region45: #{tpu_custom_call.1} parent=11 // pred_check
          %p370 = pneg %p263
        $region46: #{tpu_custom_call.1} parent=11 // pred_check_branch
          %372 = sbr.rel (%p370) target = $region48
        $region47: #{tpu_custom_call.1} parent=11 // pred_region
          _
        $region48: #{tpu_custom_call.1} parent=11 // pred_fallthru
          _
        // Predicated region
        $region49: #{tpu_custom_call.1} parent=11 // pred_check
          %p373 = pneg %p284
        $region50: #{tpu_custom_call.1} parent=11 // pred_check_branch
          %375 = sbr.rel (%p373) target = $region52
        $region51: #{tpu_custom_call.1} parent=11 // pred_region
          _
        $region52: #{tpu_custom_call.1} parent=11 // pred_fallthru
          _
        // Predicated region
        $region53: #{tpu_custom_call.1} parent=11 // pred_check
          %p376 = pneg %p305
        $region54: #{tpu_custom_call.1} parent=11 // pred_check_branch
          %378 = sbr.rel (%p376) target = $region56
        $region55: #{tpu_custom_call.1} parent=11 // pred_region
          _
        $region56: #{tpu_custom_call.1} parent=11 // pred_fallthru
          _
      $region12: #{tpu_custom_call.1} parent=5 // pred_fallthru
        _
      %p379 = scmp.lt.s32.totalorder %s22, 2
      // Predicated region
      $region57: #{tpu_custom_call.1} parent=5 // pred_check
        %p380 = pneg %p379
      $region58: #{tpu_custom_call.1} parent=5 // pred_check_branch
        %382 = sbr.rel (%p380) target = $region60
      $region59: #{tpu_custom_call.1} parent=5 // pred_region
        // Predicated region
        $region61: #{tpu_custom_call.1} parent=59 // pred_check
          %p383 = pneg %p42
        $region62: #{tpu_custom_call.1} parent=59 // pred_check_branch
          %385 = sbr.rel (%p383) target = $region64
        $region63: #{tpu_custom_call.1} parent=59 // pred_region
          %s386 = smul.u32 8, %s22
          %p387 = scmp.lt.s32.totalorder %s386, 15
          %s388 = scalar_select %p387, %s386, 15
          %s389 = smul.addr %s388, 4
          %s390 = scalar_lea.vmem %s0, %s389
          %s391 = smul.u32 8, %s22
        $region64: #{tpu_custom_call.1} parent=59 // pred_fallthru
          _
        // Predicated region
        $region65: #{tpu_custom_call.1} parent=59 // pred_check
          %p392 = pneg %p68
        $region66: #{tpu_custom_call.1} parent=59 // pred_check_branch
          %394 = sbr.rel (%p392) target = $region68
        $region67: #{tpu_custom_call.1} parent=59 // pred_region
          %s395 = smul.u32 8, %s22
          %p396 = scmp.lt.s32.totalorder %s395, 15
          %s397 = scalar_select %p396, %s395, 15
          %s398 = smul.addr %s397, 4
          %s399 = scalar_lea.vmem %s1, %s398
          %s400 = smul.u32 8, %s22
        $region68: #{tpu_custom_call.1} parent=59 // pred_fallthru
          _
      $region60: #{tpu_custom_call.1} parent=5 // pred_fallthru
        _
      %p401 = scmp.le.s32.totalorder 1, %s22
      %p402 = scmp.lt.s32.totalorder %s22, 3
      %p403 = pnand %p401, %p402
      %p404 = pneg %p403
      // Predicated region
      $region69: #{tpu_custom_call.1} parent=5 // pred_check
        _
      $region70: #{tpu_custom_call.1} parent=5 // pred_check_branch
        %406 = sbr.rel (%p403) target = $region72
      $region71: #{tpu_custom_call.1} parent=5 // pred_region
        %s407 = ssub.s32 %s22, 1
        %s408 = smul.u32 8, %s27
        %p409 = scmp.lt.s32.totalorder %s408, 15
        %s410 = scalar_select %p409, %s408, 15
        %s411 = smul.addr %s410, 4
        %s412 = scalar_lea.vmem %s0, %s411
        %p413 = pneg %p48
        %p414 = pneg %p45
        %s415 = smul.u32 8, %s27
        %p416 = scmp.lt.s32.totalorder %s415, 15
        %s417 = scalar_select %p416, %s415, 15
        %s418 = smul.addr %s417, 4
        %s419 = scalar_lea.vmem %s1, %s418
        %p420 = pneg %p74
        %p421 = pneg %p71
        %p422 = pneg %p95
        %p423 = pneg %p92
        %p424 = pneg %p116
        %p425 = pneg %p113
        %p426 = pneg %p137
        %p427 = pneg %p134
        %p428 = pneg %p158
        %p429 = pneg %p155
        %p430 = pneg %p179
        %p431 = pneg %p176
        %p432 = pneg %p200
        %p433 = pneg %p197
        %p434 = pneg %p221
        %p435 = pneg %p218
        %p436 = pneg %p242
        %p437 = pneg %p239
        %p438 = pneg %p263
        %p439 = pneg %p260
        %p440 = pneg %p284
        %p441 = pneg %p281
        %p442 = pneg %p305
        %p443 = pneg %p302
        %p444 = pneg %p331
        %p445 = pneg %p328
        %s446 = sand.u32 %s318, 1
        %s447 = scalar_lea.sflag [#allocation3], %s446
        %s448 = sand.u32 %s318, 1
        %s449 = smul.addr %s448, 128
        %s450 = scalar_lea.vmem [#allocation2], %s449
        %s451 = smul.u32 8, %s27
        %p452 = scmp.lt.s32.totalorder %s451, 15
        %s453 = scalar_select %p452, %s451, 15
        %s454 = smul.addr %s453, 4
        %s455 = scalar_lea.vmem %s0, %s454
        %s456 = smul.u32 8, %s27
        %s457 = smul.u32 8, %s27
        %p458 = scmp.lt.s32.totalorder %s457, 15
        %s459 = scalar_select %p458, %s457, 15
        %s460 = smul.addr %s459, 4
        %s461 = scalar_lea.vmem %s1, %s460
        %s462 = smul.u32 8, %s27
        %s463 = smul.u32 8, %s27
        %v465 = vld [vmem:[%s455] sm:$0xf]
        %v466 = vld [vmem:[%s455 + $0x4] sm:$0xf]
        %v467 = vld [vmem:[%s455 + $0x8] sm:$0xf]
        %v468 = vld [vmem:[%s455 + $0xc] sm:$0xf]
        %v469 = vld [vmem:[%s455 + $0x10] sm:$0xf]
        %v470 = vld [vmem:[%s455 + $0x14] sm:$0xf]
        %v471 = vld [vmem:[%s455 + $0x18] sm:$0xf]
        %v472 = vld [vmem:[%s455 + $0x1c] sm:$0xf]
        %v473 = vld [vmem:[%s2] sm:$0xf]
        %v474 = vld [vmem:[%s2 + $0x4] sm:$0xf]
        %v475 = vld [vmem:[%s2 + $0x8] sm:$0xf]
        %v476 = vld [vmem:[%s2 + $0xc] sm:$0xf]
        %v477 = vld [vmem:[%s2 + $0x10] sm:$0xf]
        %v478 = vld [vmem:[%s2 + $0x14] sm:$0x3]
        %v479 = vld [vmem:[%s3] sm:$0x1]
        %v481 = vperm.slane %v479, 0
        %v491 = vunpack.c.l.b16 %v465
        %v492 = vunpack.c.l.b16 %v466
        %v493 = vunpack.c.l.b16 %v467
        %v494 = vunpack.c.l.b16 %v468
        %v495 = vunpack.c.l.b16 %v469
        %v496 = vunpack.c.l.b16 %v470
        %v497 = vunpack.c.l.b16 %v471
        %v498 = vunpack.c.l.b16 %v472
        %v499 = vpack.c.b16 %v492, %v491
        %v500 = vpack.c.b16 %v494, %v493
        %v501 = vpack.c.b16 %v496, %v495
        %v502 = vpack.c.b16 %v498, %v497
        %v509 = vunpack.c.l.b16 %v473
        %v510 = vunpack.c.l.b16 %v474
        %v511 = vunpack.c.l.b16 %v475
        %v512 = vunpack.c.l.b16 %v476
        %v513 = vunpack.c.l.b16 %v477
        %v514 = vunpack.c.l.b16 %v478
        %v515 = vpack.c.b16 %v510, %v509
        %v516 = vpack.c.b16 %v512, %v511
        %v517 = vpack.c.b16 %v514, %v513
        %vm520 = vcmask 359424
        %v522 = vsel %vm520, %v499, 0
        %v525 = vsel %vm520, %v500, 0
        %v528 = vsel %vm520, %v501, 0
        %v531 = vsel %vm520, %v502, 0
        %vm533 = vcmask 1045504
        %v535 = vsel %vm533, %v517, 0
        %537 = vmatpush.bf16.msra.mxu0 0
        %538 = vmatpush.bf16.msra.mxu0 0
        %539 = vmatpush.bf16.msra.mxu0 0
        %540 = vmatpush.bf16.msra.mxu0 0
        %541 = vmatpush.bf16.msra.mxu0 0
        %542 = vmatpush.bf16.msra.mxu0 %v535
        %543 = vmatpush.bf16.msra.mxu0 %v516
        %544 = vmatpush.bf16.msra.mxu0 %v515
        %545 = vmatmul.bf16.gmra.mxu0 %v522
        %v546 = vpop.f32.mrf.mxu0
        %v547 = vadd.f32 %v481, %v546
        %v548 = vpop.f32.mrf.mxu0
        %v549 = vadd.f32 %v481, %v548
        %550 = vmatmul.bf16.gmra.mxu0 %v525
        %v551 = vpop.f32.mrf.mxu0
        %v552 = vadd.f32 %v481, %v551
        %v553 = vpop.f32.mrf.mxu0
        %v554 = vadd.f32 %v481, %v553
        %555 = vmatmul.bf16.gmra.mxu0 %v528
        %v556 = vpop.f32.mrf.mxu0
        %v557 = vadd.f32 %v481, %v556
        %v558 = vpop.f32.mrf.mxu0
        %v559 = vadd.f32 %v481, %v558
        %560 = vmatmul.bf16.gmra.mxu0 %v531
        %v561 = vpop.f32.mrf.mxu0
        %v562 = vadd.f32 %v481, %v561
        %v563 = vpop.f32.mrf.mxu0
        %v564 = vadd.f32 %v481, %v563
        %565 = vdwg.mxu0
        %v566 = vmul.f32 %v547, 0.5
        %v567 = vmul.f32 %v549, 0.5
        %v568 = vmul.f32 %v552, 0.5
        %v569 = vmul.f32 %v554, 0.5
        %v570 = vmul.f32 %v557, 0.5
        %v571 = vmul.f32 %v559, 0.5
        %v572 = vmul.f32 %v562, 0.5
        %v573 = vmul.f32 %v564, 0.5
        %v574 = vtanh.pop %v566
        %v575 = vtanh.pop %v567
        %v576 = vtanh.pop %v568
        %v577 = vtanh.pop %v569
        %v578 = vtanh.pop %v570
        %v579 = vtanh.pop %v571
        %v580 = vtanh.pop %v572
        %v581 = vtanh.pop %v573
        %v582 = vmul.f32 %v574, 0.5
        %v583 = vmul.f32 %v575, 0.5
        %v584 = vmul.f32 %v576, 0.5
        %v585 = vmul.f32 %v577, 0.5
        %v586 = vmul.f32 %v578, 0.5
        %v587 = vmul.f32 %v579, 0.5
        %v588 = vmul.f32 %v580, 0.5
        %v589 = vmul.f32 %v581, 0.5
        %v590 = vadd.f32 %v582, 0.5
        %v591 = vadd.f32 %v583, 0.5
        %v592 = vadd.f32 %v584, 0.5
        %v593 = vadd.f32 %v585, 0.5
        %v594 = vadd.f32 %v586, 0.5
        %v595 = vadd.f32 %v587, 0.5
        %v596 = vadd.f32 %v588, 0.5
        %v597 = vadd.f32 %v589, 0.5
        %v598 = vpack.c.bf16 %v591, %v590
        %v599 = vpack.c.bf16 %v593, %v592
        %v600 = vpack.c.bf16 %v595, %v594
        %v601 = vpack.c.bf16 %v597, %v596
        %v602 = vld [vmem:[%s4] sm:$0xf]
        %v603 = vld [vmem:[%s4 + $0x4] sm:$0xf]
        %v604 = vld [vmem:[%s4 + $0x8] sm:$0xf]
        %v605 = vld [vmem:[%s4 + $0xc] sm:$0xf]
        %v606 = vld [vmem:[%s4 + $0x10] sm:$0xf]
        %v607 = vld [vmem:[%s4 + $0x14] sm:$0xf]
        %v608 = vld [vmem:[%s4 + $0x18] sm:$0xf]
        %v609 = vld [vmem:[%s4 + $0x1c] sm:$0xf]
        %v610 = vld [vmem:[%s4 + $0x20] sm:$0xf]
        %v611 = vld [vmem:[%s4 + $0x24] sm:$0xf]
        %v612 = vld [vmem:[%s4 + $0x28] sm:$0xf]
        %v613 = vld [vmem:[%s4 + $0x2c] sm:$0xf]
        %v614 = vld [vmem:[%s4 + $0x30] sm:$0xf]
        %v615 = vld [vmem:[%s4 + $0x34] sm:$0xf]
        %v616 = vld [vmem:[%s4 + $0x38] sm:$0xf]
        %v617 = vld [vmem:[%s4 + $0x3c] sm:$0xf]
        %v618 = vld [vmem:[%s5] sm:$0x1]
        %v620 = vperm.slane %v618, 0
        %v638 = vunpack.c.l.b16 %v602
        %v639 = vunpack.c.l.b16 %v603
        %v640 = vunpack.c.l.b16 %v604
        %v641 = vunpack.c.l.b16 %v605
        %v642 = vunpack.c.l.b16 %v606
        %v643 = vunpack.c.l.b16 %v607
        %v644 = vunpack.c.l.b16 %v608
        %v645 = vunpack.c.l.b16 %v609
        %v646 = vunpack.c.l.b16 %v610
        %v647 = vunpack.c.l.b16 %v611
        %v648 = vunpack.c.l.b16 %v612
        %v649 = vunpack.c.l.b16 %v613
        %v650 = vunpack.c.l.b16 %v614
        %v651 = vunpack.c.l.b16 %v615
        %v652 = vunpack.c.l.b16 %v616
        %v653 = vunpack.c.l.b16 %v617
        %v654 = vpack.c.b16 %v639, %v638
        %v655 = vpack.c.b16 %v641, %v640
        %v656 = vpack.c.b16 %v643, %v642
        %v657 = vpack.c.b16 %v645, %v644
        %v658 = vpack.c.b16 %v647, %v646
        %v659 = vpack.c.b16 %v649, %v648
        %v660 = vpack.c.b16 %v651, %v650
        %v661 = vpack.c.b16 %v653, %v652
        %670 = vmatpush.bf16.msra.mxu0 %v661
        %671 = vmatpush.bf16.msra.mxu0 %v660
        %672 = vmatpush.bf16.msra.mxu0 %v659
        %673 = vmatpush.bf16.msra.mxu0 %v658
        %674 = vmatpush.bf16.msra.mxu0 %v657
        %675 = vmatpush.bf16.msra.mxu0 %v656
        %676 = vmatpush.bf16.msra.mxu0 %v655
        %677 = vmatpush.bf16.msra.mxu0 %v654
        %678 = vmatmul.bf16.gmra.mxu0 %v598
        %v679 = vpop.f32.mrf.mxu0
        %v680 = vadd.f32 %v620, %v679
        %v681 = vpop.f32.mrf.mxu0
        %v682 = vadd.f32 %v620, %v681
        %683 = vmatmul.bf16.gmra.mxu0 %v599
        %v684 = vpop.f32.mrf.mxu0
        %v685 = vadd.f32 %v620, %v684
        %v686 = vpop.f32.mrf.mxu0
        %v687 = vadd.f32 %v620, %v686
        %688 = vmatmul.bf16.gmra.mxu0 %v600
        %v689 = vpop.f32.mrf.mxu0
        %v690 = vadd.f32 %v620, %v689
        %v691 = vpop.f32.mrf.mxu0
        %v692 = vadd.f32 %v620, %v691
        %693 = vmatmul.bf16.gmra.mxu0 %v601
        %v694 = vpop.f32.mrf.mxu0
        %v695 = vadd.f32 %v620, %v694
        %v696 = vpop.f32.mrf.mxu0
        %v697 = vadd.f32 %v620, %v696
        %698 = vdwg.mxu0
        %v699 = vmul.f32 %v680, 0.5
        %v700 = vmul.f32 %v682, 0.5
        %v701 = vmul.f32 %v685, 0.5
        %v702 = vmul.f32 %v687, 0.5
        %v703 = vmul.f32 %v690, 0.5
        %v704 = vmul.f32 %v692, 0.5
        %v705 = vmul.f32 %v695, 0.5
        %v706 = vmul.f32 %v697, 0.5
        %v707 = vtanh.pop %v699
        %v708 = vtanh.pop %v700
        %v709 = vtanh.pop %v701
        %v710 = vtanh.pop %v702
        %v711 = vtanh.pop %v703
        %v712 = vtanh.pop %v704
        %v713 = vtanh.pop %v705
        %v714 = vtanh.pop %v706
        %v715 = vmul.f32 %v707, 0.5
        %v716 = vmul.f32 %v708, 0.5
        %v717 = vmul.f32 %v709, 0.5
        %v718 = vmul.f32 %v710, 0.5
        %v719 = vmul.f32 %v711, 0.5
        %v720 = vmul.f32 %v712, 0.5
        %v721 = vmul.f32 %v713, 0.5
        %v722 = vmul.f32 %v714, 0.5
        %v723 = vadd.f32 %v715, 0.5
        %v724 = vadd.f32 %v716, 0.5
        %v725 = vadd.f32 %v717, 0.5
        %v726 = vadd.f32 %v718, 0.5
        %v727 = vadd.f32 %v719, 0.5
        %v728 = vadd.f32 %v720, 0.5
        %v729 = vadd.f32 %v721, 0.5
        %v730 = vadd.f32 %v722, 0.5
        %v731 = vpack.c.bf16 %v724, %v723
        %v732 = vpack.c.bf16 %v726, %v725
        %v733 = vpack.c.bf16 %v728, %v727
        %v734 = vpack.c.bf16 %v730, %v729
        %v735 = vld [vmem:[%s6] sm:$0xf]
        %v736 = vld [vmem:[%s6 + $0x4] sm:$0xf]
        %v737 = vld [vmem:[%s6 + $0x8] sm:$0xf]
        %v738 = vld [vmem:[%s6 + $0xc] sm:$0xf]
        %v739 = vld [vmem:[%s6 + $0x10] sm:$0xf]
        %v740 = vld [vmem:[%s6 + $0x14] sm:$0xf]
        %v741 = vld [vmem:[%s6 + $0x18] sm:$0xf]
        %v742 = vld [vmem:[%s6 + $0x1c] sm:$0xf]
        %v743 = vld [vmem:[%s7] sm:$0x1]
        %v745 = vperm.slane %v743, 0
        %v755 = vunpack.c.l.b16 %v735
        %v756 = vunpack.c.l.b16 %v736
        %v757 = vunpack.c.l.b16 %v737
        %v758 = vunpack.c.l.b16 %v738
        %v759 = vunpack.c.l.b16 %v739
        %v760 = vunpack.c.l.b16 %v740
        %v761 = vunpack.c.l.b16 %v741
        %v762 = vunpack.c.l.b16 %v742
        %v763 = vpack.c.b16 %v756, %v755
        %v764 = vpack.c.b16 %v758, %v757
        %v765 = vpack.c.b16 %v760, %v759
        %v766 = vpack.c.b16 %v762, %v761
        %vm771 = vcmask 523264
        %v773 = vsel %vm771, %v731, 0
        %v776 = vsel %vm771, %v732, 0
        %v779 = vsel %vm771, %v733, 0
        %v782 = vsel %vm771, %v734, 0
        %784 = vmatpush.bf16.msra.mxu0 0
        %785 = vmatpush.bf16.msra.mxu0 0
        %786 = vmatpush.bf16.msra.mxu0 0
        %787 = vmatpush.bf16.msra.mxu0 0
        %788 = vmatpush.bf16.msra.mxu0 %v766
        %789 = vmatpush.bf16.msra.mxu0 %v765
        %790 = vmatpush.bf16.msra.mxu0 %v764
        %791 = vmatpush.bf16.msra.mxu0 %v763
        %792 = vmatmul.bf16.gmra.mxu0 %v773
        %v793 = vpop.f32.mrf.mxu0
        %v794 = vadd.f32 %v745, %v793
        %v795 = vpop.f32.mrf.mxu0
        %v796 = vadd.f32 %v745, %v795
        %797 = vmatmul.bf16.gmra.mxu0 %v776
        %v798 = vpop.f32.mrf.mxu0
        %v799 = vadd.f32 %v745, %v798
        %v800 = vpop.f32.mrf.mxu0
        %v801 = vadd.f32 %v745, %v800
        %802 = vmatmul.bf16.gmra.mxu0 %v779
        %v803 = vpop.f32.mrf.mxu0
        %v804 = vadd.f32 %v745, %v803
        %v805 = vpop.f32.mrf.mxu0
        %v806 = vadd.f32 %v745, %v805
        %807 = vmatmul.bf16.gmra.mxu0 %v782
        %v808 = vpop.f32.mrf.mxu0
        %v809 = vadd.f32 %v745, %v808
        %v810 = vpop.f32.mrf.mxu0
        %v811 = vadd.f32 %v745, %v810
        %812 = vdwg.mxu0
        %v813 = vmul.f32 %v794, 0.5
        %v814 = vmul.f32 %v796, 0.5
        %v815 = vmul.f32 %v799, 0.5
        %v816 = vmul.f32 %v801, 0.5
        %v817 = vmul.f32 %v804, 0.5
        %v818 = vmul.f32 %v806, 0.5
        %v819 = vmul.f32 %v809, 0.5
        %v820 = vmul.f32 %v811, 0.5
        %v821 = vtanh.pop %v813
        %v822 = vtanh.pop %v814
        %v823 = vtanh.pop %v815
        %v824 = vtanh.pop %v816
        %v825 = vtanh.pop %v817
        %v826 = vtanh.pop %v818
        %v827 = vtanh.pop %v819
        %v828 = vtanh.pop %v820
        %v829 = vmul.f32 %v821, 0.5
        %v830 = vmul.f32 %v822, 0.5
        %v831 = vmul.f32 %v823, 0.5
        %v832 = vmul.f32 %v824, 0.5
        %v833 = vmul.f32 %v825, 0.5
        %v834 = vmul.f32 %v826, 0.5
        %v835 = vmul.f32 %v827, 0.5
        %v836 = vmul.f32 %v828, 0.5
        %v837 = vadd.f32 %v829, 0.5
        %v838 = vadd.f32 %v830, 0.5
        %v839 = vadd.f32 %v831, 0.5
        %v840 = vadd.f32 %v832, 0.5
        %v841 = vadd.f32 %v833, 0.5
        %v842 = vadd.f32 %v834, 0.5
        %v843 = vadd.f32 %v835, 0.5
        %v844 = vadd.f32 %v836, 0.5
        %v845 = vpack.c.bf16 %v838, %v837
        %v846 = vpack.c.bf16 %v840, %v839
        %v847 = vpack.c.bf16 %v842, %v841
        %v848 = vpack.c.bf16 %v844, %v843
        %v849 = vld [vmem:[%s8] sm:$0xf]
        %v850 = vld [vmem:[%s8 + $0x4] sm:$0xf]
        %v851 = vld [vmem:[%s8 + $0x8] sm:$0xf]
        %v852 = vld [vmem:[%s8 + $0xc] sm:$0xf]
        %v853 = vld [vmem:[%s8 + $0x10] sm:$0xf]
        %v854 = vld [vmem:[%s8 + $0x14] sm:$0xf]
        %v855 = vld [vmem:[%s8 + $0x18] sm:$0xf]
        %v856 = vld [vmem:[%s8 + $0x1c] sm:$0xf]
        %v857 = vld [vmem:[%s8 + $0x20] sm:$0xf]
        %v858 = vld [vmem:[%s8 + $0x24] sm:$0xf]
        %v859 = vld [vmem:[%s8 + $0x28] sm:$0xf]
        %v860 = vld [vmem:[%s8 + $0x2c] sm:$0xf]
        %v861 = vld [vmem:[%s8 + $0x30] sm:$0xf]
        %v862 = vld [vmem:[%s8 + $0x34] sm:$0xf]
        %v863 = vld [vmem:[%s8 + $0x38] sm:$0xf]
        %v864 = vld [vmem:[%s8 + $0x3c] sm:$0xf]
        %v865 = vld [vmem:[%s461] sm:$0xf]
        %v866 = vld [vmem:[%s461 + $0x4] sm:$0xf]
        %v867 = vld [vmem:[%s461 + $0x8] sm:$0xf]
        %v868 = vld [vmem:[%s461 + $0xc] sm:$0xf]
        %v869 = vld [vmem:[%s461 + $0x10] sm:$0xf]
        %v870 = vld [vmem:[%s461 + $0x14] sm:$0xf]
        %v871 = vld [vmem:[%s461 + $0x18] sm:$0xf]
        %v872 = vld [vmem:[%s461 + $0x1c] sm:$0xf]
        %v873 = vld [vmem:[%s9] sm:$0xf]
        %v874 = vld [vmem:[%s9 + $0x4] sm:$0xf]
        %v883 = vunpack.c.l.b16 %v865
        %v884 = vunpack.c.l.b16 %v866
        %v885 = vunpack.c.l.b16 %v867
        %v886 = vunpack.c.l.b16 %v868
        %v887 = vunpack.c.l.b16 %v869
        %v888 = vunpack.c.l.b16 %v870
        %v889 = vunpack.c.l.b16 %v871
        %v890 = vunpack.c.l.b16 %v872
        %v891 = vpack.c.b16 %v884, %v883
        %v892 = vpack.c.b16 %v886, %v885
        %v893 = vpack.c.b16 %v888, %v887
        %v894 = vpack.c.b16 %v890, %v889
        %v897 = vunpack.c.l.b16 %v873
        %v898 = vunpack.c.l.b16 %v874
        %v899 = vpack.c.b16 %v898, %v897
        %vm901 = vcmask 130048
        %v903 = vsel %vm901, %v891, 0
        %v906 = vsel %vm901, %v892, 0
        %v909 = vsel %vm901, %v893, 0
        %v912 = vsel %vm901, %v894, 0
        %914 = vmatpush.bf16.msra.mxu0 0
        %915 = vmatpush.bf16.msra.mxu0 0
        %916 = vmatpush.bf16.msra.mxu0 0
        %917 = vmatpush.bf16.msra.mxu0 0
        %918 = vmatpush.bf16.msra.mxu0 0
        %919 = vmatpush.bf16.msra.mxu0 0
        %920 = vmatpush.bf16.msra.mxu0 0
        %921 = vmatpush.bf16.msra.mxu0 %v899
        %922 = vmatmul.bf16.gmra.mxu0 %v903
        %v923 = vpop.f32.mrf.mxu0
        %v924 = vadd.f32 0.0, %v923
        %v925 = vpop.f32.mrf.mxu0
        %v926 = vadd.f32 0.0, %v925
        %927 = vmatmul.bf16.gmra.mxu0 %v906
        %v928 = vpop.f32.mrf.mxu0
        %v929 = vadd.f32 0.0, %v928
        %v930 = vpop.f32.mrf.mxu0
        %v931 = vadd.f32 0.0, %v930
        %932 = vmatmul.bf16.gmra.mxu0 %v909
        %v933 = vpop.f32.mrf.mxu0
        %v934 = vadd.f32 0.0, %v933
        %v935 = vpop.f32.mrf.mxu0
        %v936 = vadd.f32 0.0, %v935
        %937 = vmatmul.bf16.gmra.mxu0 %v912
        %v938 = vpop.f32.mrf.mxu0
        %v939 = vadd.f32 0.0, %v938
        %v940 = vpop.f32.mrf.mxu0
        %v941 = vadd.f32 0.0, %v940
        %942 = vdwg.mxu0
        %v959 = vunpack.c.l.b16 %v849
        %v960 = vunpack.c.l.b16 %v850
        %v961 = vunpack.c.l.b16 %v851
        %v962 = vunpack.c.l.b16 %v852
        %v963 = vunpack.c.l.b16 %v853
        %v964 = vunpack.c.l.b16 %v854
        %v965 = vunpack.c.l.b16 %v855
        %v966 = vunpack.c.l.b16 %v856
        %v967 = vunpack.c.l.b16 %v857
        %v968 = vunpack.c.l.b16 %v858
        %v969 = vunpack.c.l.b16 %v859
        %v970 = vunpack.c.l.b16 %v860
        %v971 = vunpack.c.l.b16 %v861
        %v972 = vunpack.c.l.b16 %v862
        %v973 = vunpack.c.l.b16 %v863
        %v974 = vunpack.c.l.b16 %v864
        %v975 = vpack.c.b16 %v960, %v959
        %v976 = vpack.c.b16 %v962, %v961
        %v977 = vpack.c.b16 %v964, %v963
        %v978 = vpack.c.b16 %v966, %v965
        %v979 = vpack.c.b16 %v968, %v967
        %v980 = vpack.c.b16 %v970, %v969
        %v981 = vpack.c.b16 %v972, %v971
        %v982 = vpack.c.b16 %v974, %v973
        %991 = vmatpush.bf16.msra.mxu0 %v982
        %992 = vmatpush.bf16.msra.mxu0 %v981
        %993 = vmatpush.bf16.msra.mxu0 %v980
        %994 = vmatpush.bf16.msra.mxu0 %v979
        %995 = vmatpush.bf16.msra.mxu0 %v978
        %996 = vmatpush.bf16.msra.mxu0 %v977
        %997 = vmatpush.bf16.msra.mxu0 %v976
        %998 = vmatpush.bf16.msra.mxu0 %v975
        %999 = vmatmul.bf16.gmra.mxu0 %v845
        %v1000 = vpop.f32.mrf.mxu0
        %v1001 = vadd.f32 %v924, %v1000
        %v1002 = vpop.f32.mrf.mxu0
        %v1003 = vadd.f32 %v926, %v1002
        %1004 = vmatmul.bf16.gmra.mxu0 %v846
        %v1005 = vpop.f32.mrf.mxu0
        %v1006 = vadd.f32 %v929, %v1005
        %v1007 = vpop.f32.mrf.mxu0
        %v1008 = vadd.f32 %v931, %v1007
        %1009 = vmatmul.bf16.gmra.mxu0 %v847
        %v1010 = vpop.f32.mrf.mxu0
        %v1011 = vadd.f32 %v934, %v1010
        %v1012 = vpop.f32.mrf.mxu0
        %v1013 = vadd.f32 %v936, %v1012
        %1014 = vmatmul.bf16.gmra.mxu0 %v848
        %v1015 = vpop.f32.mrf.mxu0
        %v1016 = vadd.f32 %v939, %v1015
        %v1017 = vpop.f32.mrf.mxu0
        %v1018 = vadd.f32 %v941, %v1017
        %1019 = vdwg.mxu0
        %v1020 = vld [vmem:[%s10] sm:$0x1]
        %v1022 = vperm.slane %v1020, 0
        %v1024 = vadd.f32 %v1001, %v1022
        %v1025 = vadd.f32 %v1003, %v1022
        %v1026 = vadd.f32 %v1006, %v1022
        %v1027 = vadd.f32 %v1008, %v1022
        %v1028 = vadd.f32 %v1011, %v1022
        %v1029 = vadd.f32 %v1013, %v1022
        %v1030 = vadd.f32 %v1016, %v1022
        %v1031 = vadd.f32 %v1018, %v1022
        %v1032 = vmul.f32 %v1024, 0.5
        %v1033 = vmul.f32 %v1025, 0.5
        %v1034 = vmul.f32 %v1026, 0.5
        %v1035 = vmul.f32 %v1027, 0.5
        %v1036 = vmul.f32 %v1028, 0.5
        %v1037 = vmul.f32 %v1029, 0.5
        %v1038 = vmul.f32 %v1030, 0.5
        %v1039 = vmul.f32 %v1031, 0.5
        %v1040 = vtanh.pop %v1032
        %v1041 = vtanh.pop %v1033
        %v1042 = vtanh.pop %v1034
        %v1043 = vtanh.pop %v1035
        %v1044 = vtanh.pop %v1036
        %v1045 = vtanh.pop %v1037
        %v1046 = vtanh.pop %v1038
        %v1047 = vtanh.pop %v1039
        %v1048 = vmul.f32 %v1040, 0.5
        %v1049 = vmul.f32 %v1041, 0.5
        %v1050 = vmul.f32 %v1042, 0.5
        %v1051 = vmul.f32 %v1043, 0.5
        %v1052 = vmul.f32 %v1044, 0.5
        %v1053 = vmul.f32 %v1045, 0.5
        %v1054 = vmul.f32 %v1046, 0.5
        %v1055 = vmul.f32 %v1047, 0.5
        %v1056 = vadd.f32 %v1048, 0.5
        %v1057 = vadd.f32 %v1049, 0.5
        %v1058 = vadd.f32 %v1050, 0.5
        %v1059 = vadd.f32 %v1051, 0.5
        %v1060 = vadd.f32 %v1052, 0.5
        %v1061 = vadd.f32 %v1053, 0.5
        %v1062 = vadd.f32 %v1054, 0.5
        %v1063 = vadd.f32 %v1055, 0.5
        %v1064 = vpack.c.bf16 %v1057, %v1056
        %v1065 = vpack.c.bf16 %v1059, %v1058
        %v1066 = vpack.c.bf16 %v1061, %v1060
        %v1067 = vpack.c.bf16 %v1063, %v1062
        %v1068 = vld [vmem:[%s11] sm:$0xf]
        %v1069 = vld [vmem:[%s11 + $0x4] sm:$0xf]
        %v1070 = vld [vmem:[%s11 + $0x8] sm:$0xf]
        %v1071 = vld [vmem:[%s11 + $0xc] sm:$0xf]
        %v1072 = vld [vmem:[%s11 + $0x10] sm:$0xf]
        %v1073 = vld [vmem:[%s11 + $0x14] sm:$0xf]
        %v1074 = vld [vmem:[%s11 + $0x18] sm:$0xf]
        %v1075 = vld [vmem:[%s11 + $0x1c] sm:$0xf]
        %v1076 = vld [vmem:[%s11 + $0x20] sm:$0xf]
        %v1077 = vld [vmem:[%s11 + $0x24] sm:$0xf]
        %v1078 = vld [vmem:[%s11 + $0x28] sm:$0xf]
        %v1079 = vld [vmem:[%s11 + $0x2c] sm:$0xf]
        %v1080 = vld [vmem:[%s11 + $0x30] sm:$0xf]
        %v1081 = vld [vmem:[%s11 + $0x34] sm:$0xf]
        %v1082 = vld [vmem:[%s11 + $0x38] sm:$0xf]
        %v1083 = vld [vmem:[%s11 + $0x3c] sm:$0xf]
        %v1084 = vld [vmem:[%s12] sm:$0x1]
        %v1086 = vperm.slane %v1084, 0
        %v1104 = vunpack.c.l.b16 %v1068
        %v1105 = vunpack.c.l.b16 %v1069
        %v1106 = vunpack.c.l.b16 %v1070
        %v1107 = vunpack.c.l.b16 %v1071
        %v1108 = vunpack.c.l.b16 %v1072
        %v1109 = vunpack.c.l.b16 %v1073
        %v1110 = vunpack.c.l.b16 %v1074
        %v1111 = vunpack.c.l.b16 %v1075
        %v1112 = vunpack.c.l.b16 %v1076
        %v1113 = vunpack.c.l.b16 %v1077
        %v1114 = vunpack.c.l.b16 %v1078
        %v1115 = vunpack.c.l.b16 %v1079
        %v1116 = vunpack.c.l.b16 %v1080
        %v1117 = vunpack.c.l.b16 %v1081
        %v1118 = vunpack.c.l.b16 %v1082
        %v1119 = vunpack.c.l.b16 %v1083
        %v1120 = vpack.c.b16 %v1105, %v1104
        %v1121 = vpack.c.b16 %v1107, %v1106
        %v1122 = vpack.c.b16 %v1109, %v1108
        %v1123 = vpack.c.b16 %v1111, %v1110
        %v1124 = vpack.c.b16 %v1113, %v1112
        %v1125 = vpack.c.b16 %v1115, %v1114
        %v1126 = vpack.c.b16 %v1117, %v1116
        %v1127 = vpack.c.b16 %v1119, %v1118
        %1136 = vmatpush.bf16.msra.mxu0 %v1127
        %1137 = vmatpush.bf16.msra.mxu0 %v1126
        %1138 = vmatpush.bf16.msra.mxu0 %v1125
        %1139 = vmatpush.bf16.msra.mxu0 %v1124
        %1140 = vmatpush.bf16.msra.mxu0 %v1123
        %1141 = vmatpush.bf16.msra.mxu0 %v1122
        %1142 = vmatpush.bf16.msra.mxu0 %v1121
        %1143 = vmatpush.bf16.msra.mxu0 %v1120
        %1144 = vmatmul.bf16.gmra.mxu0 %v1064
        %v1145 = vpop.f32.mrf.mxu0
        %v1146 = vadd.f32 %v1086, %v1145
        %v1147 = vpop.f32.mrf.mxu0
        %v1148 = vadd.f32 %v1086, %v1147
        %1149 = vmatmul.bf16.gmra.mxu0 %v1065
        %v1150 = vpop.f32.mrf.mxu0
        %v1151 = vadd.f32 %v1086, %v1150
        %v1152 = vpop.f32.mrf.mxu0
        %v1153 = vadd.f32 %v1086, %v1152
        %1154 = vmatmul.bf16.gmra.mxu0 %v1066
        %v1155 = vpop.f32.mrf.mxu0
        %v1156 = vadd.f32 %v1086, %v1155
        %v1157 = vpop.f32.mrf.mxu0
        %v1158 = vadd.f32 %v1086, %v1157
        %1159 = vmatmul.bf16.gmra.mxu0 %v1067
        %v1160 = vpop.f32.mrf.mxu0
        %v1161 = vadd.f32 %v1086, %v1160
        %v1162 = vpop.f32.mrf.mxu0
        %v1163 = vadd.f32 %v1086, %v1162
        %1164 = vdwg.mxu0
        %v1165 = vmul.f32 %v1146, 0.5
        %v1166 = vmul.f32 %v1148, 0.5
        %v1167 = vmul.f32 %v1151, 0.5
        %v1168 = vmul.f32 %v1153, 0.5
        %v1169 = vmul.f32 %v1156, 0.5
        %v1170 = vmul.f32 %v1158, 0.5
        %v1171 = vmul.f32 %v1161, 0.5
        %v1172 = vmul.f32 %v1163, 0.5
        %v1173 = vtanh.pop %v1165
        %v1174 = vtanh.pop %v1166
        %v1175 = vtanh.pop %v1167
        %v1176 = vtanh.pop %v1168
        %v1177 = vtanh.pop %v1169
        %v1178 = vtanh.pop %v1170
        %v1179 = vtanh.pop %v1171
        %v1180 = vtanh.pop %v1172
        %v1181 = vmul.f32 %v1173, 0.5
        %v1182 = vmul.f32 %v1174, 0.5
        %v1183 = vmul.f32 %v1175, 0.5
        %v1184 = vmul.f32 %v1176, 0.5
        %v1185 = vmul.f32 %v1177, 0.5
        %v1186 = vmul.f32 %v1178, 0.5
        %v1187 = vmul.f32 %v1179, 0.5
        %v1188 = vmul.f32 %v1180, 0.5
        %v1189 = vadd.f32 %v1181, 0.5
        %v1190 = vadd.f32 %v1182, 0.5
        %v1191 = vadd.f32 %v1183, 0.5
        %v1192 = vadd.f32 %v1184, 0.5
        %v1193 = vadd.f32 %v1185, 0.5
        %v1194 = vadd.f32 %v1186, 0.5
        %v1195 = vadd.f32 %v1187, 0.5
        %v1196 = vadd.f32 %v1188, 0.5
        %1197 = vst [vmem:[%s450] sm:$0xff] %v837
        %1198 = vst [vmem:[%s450 + $0x10] sm:$0xff] %v838
        %1199 = vst [vmem:[%s450 + $0x20] sm:$0xff] %v839
        %1200 = vst [vmem:[%s450 + $0x30] sm:$0xff] %v840
        %1201 = vst [vmem:[%s450 + $0x40] sm:$0xff] %v841
        %1202 = vst [vmem:[%s450 + $0x50] sm:$0xff] %v842
        %1203 = vst [vmem:[%s450 + $0x60] sm:$0xff] %v843
        %1204 = vst [vmem:[%s450 + $0x70] sm:$0xff] %v844
        %1205 = vst [vmem:[%s450 + $0x8] sm:$0xff] %v1189
        %1206 = vst [vmem:[%s450 + $0x18] sm:$0xff] %v1190
        %1207 = vst [vmem:[%s450 + $0x28] sm:$0xff] %v1191
        %1208 = vst [vmem:[%s450 + $0x38] sm:$0xff] %v1192
        %1209 = vst [vmem:[%s450 + $0x48] sm:$0xff] %v1193
        %1210 = vst [vmem:[%s450 + $0x58] sm:$0xff] %v1194
        %1211 = vst [vmem:[%s450 + $0x68] sm:$0xff] %v1195
        %1212 = vst [vmem:[%s450 + $0x78] sm:$0xff] %v1196
        %s1213 = sand.u32 %s318, 1
        %s1214 = scalar_lea.sflag [#allocation3], %s1213
        %s1215 = sand.u32 %s318, 1
        %s1216 = smul.addr %s1215, 128
        %s1217 = scalar_lea.vmem [#allocation2], %s1216
        // Predicated region
        $region73: #{tpu_custom_call.1} parent=71 // pred_check
          %p1218 = pneg %p328
        $region74: #{tpu_custom_call.1} parent=71 // pred_check_branch
          %1220 = sbr.rel (%p1218) target = $region76
        $region75: #{tpu_custom_call.1} parent=71 // pred_region
          %s1221 = smul.u32 8, %s27
          %1223 = vsyncadd %s1214, 0
          %s1224 = smul.addr %s1221, 2
          %s1225 = smul.addr %s1224, 8
          %s1226 = scalar_lea.hbm %s13, %s1225
          %s1227 = sshll.u32 %s1217, 4
          %s1228 = int_to_ptr.vmem [resolvable:$true] %s1227
          %s1229 = sshll.u32 %s1226, 4
          %s1230 = int_to_ptr.hbm [resolvable:$true] %s1229
          %1235 = dma.vmem_to_hbm [thread:$0]  %s1228, 2048, %s1230, %s1214, 256, 256, 16
        $region76: #{tpu_custom_call.1} parent=71 // pred_fallthru
          _
      $region72: #{tpu_custom_call.1} parent=5 // pred_fallthru
        _
      %p1236 = scmp.le.s32.totalorder 2, %s22
      // Predicated region
      $region77: #{tpu_custom_call.1} parent=5 // pred_check
        %p1237 = pneg %p1236
      $region78: #{tpu_custom_call.1} parent=5 // pred_check_branch
        %1239 = sbr.rel (%p1237) target = $region80
      $region79: #{tpu_custom_call.1} parent=5 // pred_region
        %s1240 = ssub.s32 %s22, 2
        // Predicated region
        $region81: #{tpu_custom_call.1} parent=79 // pred_check
          %p1241 = pneg %p334
        $region82: #{tpu_custom_call.1} parent=79 // pred_check_branch
          %1243 = sbr.rel (%p1241) target = $region84
        $region83: #{tpu_custom_call.1} parent=79 // pred_region
          %s1244 = sand.u32 %s319, 1
          %s1245 = scalar_lea.sflag [#allocation3], %s1244
          %s1246 = sand.u32 %s319, 1
          %s1247 = smul.addr %s1246, 128
          %s1248 = scalar_lea.vmem [#allocation2], %s1247
          %1250 = dma.done %s1245, 2048
        $region84: #{tpu_custom_call.1} parent=79 // pred_fallthru
          _
      $region80: #{tpu_custom_call.1} parent=5 // pred_fallthru
        _
    $region6: #{tpu_custom_call.1} parent=1 // loop_footer
      %s26 = sadd.s32 1, %s22
    $region7: #{tpu_custom_call.1} parent=1 // loop_footer_branch
      %21 = sbr.rel target = $region3
    $region8: #{tpu_custom_call.1} parent=1 // loop_exit
      _
    %1251 = vsyncpa [#allocation3], 1
    %s1252 = scalar_lea.sflag [#allocation3], 1
    %1253 = vsyncpa %s1252, 1

</llo_original>
